<compile_context>
chip_gen: v5e
topology: v5e:2x2
jax: 0.10.0
libtpu: 0.0.40
codegen_flags: <defaults>
</compile_context>

<pallas_src>
import jax
import jax.numpy as jnp
import numpy as np
from jax.experimental import pallas as pl
from jax.experimental.pallas import tpu as pltpu


# ----------------------------- Pallas kernel --------------------------------
def _stja_kernel(x_ref, pool_ref, exp_ref, w1_ref, wtv_ref, vec_ref, out_ref):
    """One batch element, lane-dense.

    x_ref:    (1, C, T*V)       input slab (T*V is the lane dim, multiple of 128)
    pool_ref: (T*V, T+V)        pooling matrix (cols 0:T -> mean over V, cols T: -> mean over T)
    exp_ref:  (2*(T+V), T*V)    stacked expansion matrices [E_t ; E_v] (0/1 entries)
    w1_ref:   (Ci, C)           fcn 1x1 conv weight (fcn-BN folded)
    wtv_ref:  (2C, Ci)          stacked [conv_t ; conv_v] weights
    vec_ref:  (pad8(4C+Ci), 1)  packed vectors: [b_t;b_v | bn_scale | bn_bias | b1_fcn | pad]
    out_ref:  (1, C, T*V)
    """
    Ci, C = w1_ref.shape
    TV, TpV = pool_ref.shape

    x2 = x_ref[0]                                   # (C, TV), f32, lane-dense

    vecs = vec_ref[...]                             # (pad, 1)
    b_tv = vecs[0:2 * C]                            # (2C, 1) conv_t / conv_v bias
    bn_s = vecs[2 * C:3 * C]                        # (C, 1)  folded outer-BN scale
    bn_b = vecs[3 * C:4 * C]                        # (C, 1)  folded outer-BN bias
    b1 = vecs[4 * C:4 * C + Ci]                     # (Ci, 1) folded fcn bias

    # Pooled descriptors on the MXU: (C, TV) @ (TV, T+V) -> (C, T+V).
    #   cols [0, T)   = mean over V (temporal descriptor)
    #   cols [T, T+V) = mean over T (spatial descriptor)
    pooled = jnp.dot(x2, pool_ref[...], preferred_element_type=jnp.float32)

    # fcn: single merged 1x1 conv (+ folded BN) + Hardswish over both branches.
    y = jnp.dot(w1_ref[...], pooled, preferred_element_type=jnp.float32) + b1
    y = y * jnp.clip(y + 3.0, 0.0, 6.0) * (1.0 / 6.0)          # (Ci, T+V)

    # conv_t / conv_v fused as one stacked matmul; sigmoid runs on the EUP.
    z = jax.nn.sigmoid(
        jnp.dot(wtv_ref[...], y, preferred_element_type=jnp.float32) + b_tv)   # (2C, T+V)

    # Fold the outer-BN per-channel scale into the narrow t-attention BEFORE
    # the expansion matmul (a (C, T+V) multiply instead of (C, T*V)):
    #   bn_s * (x * t_att * v_att)  ==  x * ((bn_s * t_att) * v_att)
    zt_scaled = bn_s * z[0:C]                       # (C, T+V)

    # Expand t-attention / v-attention back to the lane-dense (C, TV) slab on
    # the MXU.  E_t has zero rows for the spatial columns (and E_v for the
    # temporal columns), so the wrong-branch halves of z vanish without any
    # lane slicing.
    e = exp_ref[...]
    rep_t = jnp.dot(zt_scaled, e[0:TpV], preferred_element_type=jnp.float32)          # (C, TV)
    rep_v = jnp.dot(z[C:2 * C], e[TpV:2 * TpV], preferred_element_type=jnp.float32)   # (C, TV)
    att_s = rep_t * rep_v               # = bn_scale[c] * t_att[c,t] * v_att[c,v]

    # Attention_Layer tail: relu( BN(x * att) + x ), BN folded to scale/bias,
    # residual fused algebraically:  relu( x*(att_s + 1) + bn_bias ).
    out_ref[0] = jnp.maximum(x2 * (att_s + 1.0) + bn_b, 0.0)


# ------------------------------ wrapper --------------------------------------
def _pool_expand_matrices(T, V):
    """Constant pooling / expansion matrices for the lane-dense formulation."""
    TV = T * V
    TpV = T + V
    t_idx = np.arange(TV) // V
    v_idx = np.arange(TV) % V
    pool = np.zeros((TV, TpV), np.float32)
    pool[np.arange(TV), t_idx] = 1.0 / V            # mean over V  -> temporal descriptor
    pool[np.arange(TV), T + v_idx] = 1.0 / T        # mean over T  -> spatial descriptor
    expand = np.zeros((2 * TpV, TV), np.float32)
    expand[t_idx, np.arange(TV)] = 1.0              # E_t (rows T..T+V-1 stay zero)
    expand[TpV + T + v_idx, np.arange(TV)] = 1.0    # E_v (rows 0..T-1 stay zero)
    return jnp.asarray(pool), jnp.asarray(expand)


@jax.jit
def attention_layer(x, w1f, w_tv, packed_vecs):
    """relu( BN(x * ST_Joint_Att(x)) + x ), inference-mode BNs folded into params."""
    N, C, T, V = x.shape
    TV = T * V
    TpV = T + V
    Ci = w1f.shape[0]

    pool, expand = _pool_expand_matrices(T, V)
    x2 = x.reshape(N, C, TV)                         # lane-dense slab, free reshape in XLA

    const_spec = lambda shape: pl.BlockSpec(shape, lambda n: (0, 0))

    out2 = pl.pallas_call(
        _stja_kernel,
        out_shape=jax.ShapeDtypeStruct((N, C, TV), x.dtype),
        grid_spec=pltpu.PrefetchScalarGridSpec(
            num_scalar_prefetch=0,
            # One batch element per step; extent N (>=2) keeps a parallel axis
            # so both v7x TensorCores are used (v5e/v6e are single-TC).
            grid=(N,),
            in_specs=[
                pl.BlockSpec((1, C, TV), lambda n: (n, 0, 0)),   # x slab (lane-dense)
                const_spec((TV, TpV)),                           # pooling matrix
                const_spec((2 * TpV, TV)),                       # expansion matrices
                const_spec((Ci, C)),                             # folded fcn weight
                const_spec((2 * C, Ci)),                         # stacked conv_t/conv_v weight
                const_spec(packed_vecs.shape),                   # packed bias/scale vectors
            ],
            out_specs=pl.BlockSpec((1, C, TV), lambda n: (n, 0, 0)),
        ),
        compiler_params=pltpu.CompilerParams(
            dimension_semantics=("parallel",)),
        # TODO(synk): at production ST-GCN shapes (e.g. C=256, T=288, V=25) tile T
        # and/or set vmem_limit_bytes so double-buffered (1, C, T*V) blocks fit
        # v7x's 64 MiB VMEM; bf16 activations would further halve HBM traffic.
    )(x2, pool, expand, w1f, w_tv, packed_vecs)
    return out2.reshape(N, C, T, V)


# ----------------------- parameter folding / packing -------------------------
def fold_and_pack_params(w1, b1, gamma1, beta1, mean1, var1,
                         wt, bt, wv, bv, gamma, beta, mean, var, eps=1e-5):
    Ci, C = w1.shape
    # fcn conv + BN (eval mode) folded into weight/bias.
    s1 = gamma1 / jnp.sqrt(var1 + eps)
    w1f = s1[:, None] * w1                           # (Ci, C)
    b1f = s1 * (b1 - mean1) + beta1                  # (Ci,)
    # Outer BN folded into per-channel scale/bias.
    s = gamma / jnp.sqrt(var + eps)
    bn_scale = s                                     # (C,)
    bn_bias = beta - mean * s                        # (C,)
    # Stacked conv_t / conv_v.
    w_tv = jnp.concatenate([wt, wv], axis=0)         # (2C, Ci)
    b_tv = jnp.concatenate([bt, bv], axis=0)         # (2C,)
    # Pack small vectors along sublanes: [b_tv | bn_scale | bn_bias | b1f | pad].
    rows = 4 * C + Ci
    pad = (-rows) % 8
    packed = jnp.concatenate(
        [b_tv, bn_scale, bn_bias, b1f,
         jnp.zeros((pad,), jnp.float32)])[:, None]   # (pad8(4C+Ci), 1)
    return w1f, b1f, bn_scale, bn_bias, w_tv, packed


# ----------------------- pure-JAX reference (for checking) -------------------
def attention_layer_ref(x, w1f, b1f, wt, bt, wv, bv, bn_scale, bn_bias):
    x_t = jnp.mean(x, axis=3)                        # (N, C, T)
    x_v = jnp.mean(x, axis=2)                        # (N, C, V)

    def hardswish(z):
        return z * jnp.clip(z + 3.0, 0.0, 6.0) / 6.0

    y_t = hardswish(jnp.einsum("ic,nct->nit", w1f, x_t) + b1f[None, :, None])
    y_v = hardswish(jnp.einsum("ic,ncv->niv", w1f, x_v) + b1f[None, :, None])
    t_att = jax.nn.sigmoid(jnp.einsum("ci,nit->nct", wt, y_t) + bt[None, :, None])
    v_att = jax.nn.sigmoid(jnp.einsum("ci,niv->ncv", wv, y_v) + bv[None, :, None])
    att = t_att[:, :, :, None] * v_att[:, :, None, :]
    out = bn_scale[None, :, None, None] * (x * att) + bn_bias[None, :, None, None] + x
    return jnp.maximum(out, 0.0)


# --------------------------------- main ---------------------------------------
if __name__ == "__main__":
    # Small shapes consistent with the module: N=2 batch, C=16 channels,
    # T=16 frames, V=16 joints, reduct_ratio=4 -> inner channel Ci=4.
    N, C, T, V = 2, 16, 16, 16
    reduct_ratio = 4
    Ci = C // reduct_ratio
    eps = 1e-5

    key = jax.random.PRNGKey(0)
    ks = jax.random.split(key, 16)

    x = jax.random.normal(ks[0], (N, C, T, V), dtype=jnp.float32)

    # Module parameters (deterministic synthetic init, matching nn.Module shapes).
    w1 = jax.random.normal(ks[1], (Ci, C), dtype=jnp.float32) * 0.1    # fcn 1x1 conv weight
    b1 = jax.random.normal(ks[2], (Ci,), dtype=jnp.float32) * 0.1      # fcn conv bias
    gamma1 = 1.0 + 0.1 * jax.random.normal(ks[3], (Ci,), dtype=jnp.float32)
    beta1 = 0.1 * jax.random.normal(ks[4], (Ci,), dtype=jnp.float32)
    mean1 = 0.1 * jax.random.normal(ks[5], (Ci,), dtype=jnp.float32)
    var1 = 0.5 + 0.5 * jax.random.uniform(ks[6], (Ci,), dtype=jnp.float32)

    wt = jax.random.normal(ks[7], (C, Ci), dtype=jnp.float32) * 0.1    # conv_t weight
    bt = jax.random.normal(ks[8], (C,), dtype=jnp.float32) * 0.1       # conv_t bias
    wv = jax.random.normal(ks[9], (C, Ci), dtype=jnp.float32) * 0.1    # conv_v weight
    bv = jax.random.normal(ks[10], (C,), dtype=jnp.float32) * 0.1      # conv_v bias

    gamma = 1.0 + 0.1 * jax.random.normal(ks[11], (C,), dtype=jnp.float32)  # outer BN
    beta = 0.1 * jax.random.normal(ks[12], (C,), dtype=jnp.float32)
    mean = 0.1 * jax.random.normal(ks[13], (C,), dtype=jnp.float32)
    var = 0.5 + 0.5 * jax.random.uniform(ks[14], (C,), dtype=jnp.float32)

    w1f, b1f, bn_scale, bn_bias, w_tv, packed = fold_and_pack_params(
        w1, b1, gamma1, beta1, mean1, var1, wt, bt, wv, bv,
        gamma, beta, mean, var, eps)

    out = attention_layer(x, w1f, w_tv, packed)
    out = jax.block_until_ready(out)

    ref = attention_layer_ref(x, w1f, b1f, wt, bt, wv, bv, bn_scale, bn_bias)
    np.testing.assert_allclose(np.asarray(out), np.asarray(ref), rtol=1e-4, atol=1e-4)

    print("KERNEL_OK")
</pallas_src>

<mosaic_0001>
module attributes {stable_mosaic.version = 11 : i64} {
  func.func @_stja_kernel(%arg0: i32, %arg1: memref<1x16x256xf32, #tpu.memory_space<vmem>>, %arg2: memref<256x32xf32, #tpu.memory_space<vmem>>, %arg3: memref<64x256xf32, #tpu.memory_space<vmem>>, %arg4: memref<4x16xf32, #tpu.memory_space<vmem>>, %arg5: memref<32x4xf32, #tpu.memory_space<vmem>>, %arg6: memref<72x1xf32, #tpu.memory_space<vmem>>, %arg7: memref<1x16x256xf32, #tpu.memory_space<vmem>>) attributes {dimension_semantics = [#tpu.dimension_semantics<parallel>], iteration_bounds = array<i64: 2>, scalar_prefetch = 0 : i64, scratch_operands = 0 : i64, tpu.core_type = #tpu.core_type<tc>, window_params = [{transform_indices = @transform_0, window_bounds = array<i64: 1, 16, 256>}, {pipeline_mode = #tpu.pipeline_mode<synchronous>, transform_indices = @transform_1, window_bounds = array<i64: 256, 32>}, {pipeline_mode = #tpu.pipeline_mode<synchronous>, transform_indices = @transform_2, window_bounds = array<i64: 64, 256>}, {pipeline_mode = #tpu.pipeline_mode<synchronous>, transform_indices = @transform_3, window_bounds = array<i64: 4, 16>}, {pipeline_mode = #tpu.pipeline_mode<synchronous>, transform_indices = @transform_4, window_bounds = array<i64: 32, 4>}, {pipeline_mode = #tpu.pipeline_mode<synchronous>, transform_indices = @transform_5, window_bounds = array<i64: 72, 1>}, {transform_indices = @transform_6, window_bounds = array<i64: 1, 16, 256>}]} {
    %c0 = arith.constant 0 : index
    %c0_0 = arith.constant 0 : index
    %c0_1 = arith.constant 0 : index
    %0 = vector.load %arg1[%c0, %c0_0, %c0_1] : memref<1x16x256xf32, #tpu.memory_space<vmem>>, vector<1x16x256xf32>
    %1 = vector.shape_cast %0 : vector<1x16x256xf32> to vector<16x256xf32>
    %c0_2 = arith.constant 0 : index
    %c0_3 = arith.constant 0 : index
    %2 = vector.load %arg6[%c0_2, %c0_3] : memref<72x1xf32, #tpu.memory_space<vmem>>, vector<72x1xf32>
    %3 = vector.extract_strided_slice %2 {offsets = [0, 0], sizes = [32, 1], strides = [1, 1]} : vector<72x1xf32> to vector<32x1xf32>
    %4 = vector.extract_strided_slice %2 {offsets = [32, 0], sizes = [16, 1], strides = [1, 1]} : vector<72x1xf32> to vector<16x1xf32>
    %5 = vector.extract_strided_slice %2 {offsets = [48, 0], sizes = [16, 1], strides = [1, 1]} : vector<72x1xf32> to vector<16x1xf32>
    %6 = vector.extract_strided_slice %2 {offsets = [64, 0], sizes = [4, 1], strides = [1, 1]} : vector<72x1xf32> to vector<4x1xf32>
    %c0_4 = arith.constant 0 : index
    %c0_5 = arith.constant 0 : index
    %7 = vector.load %arg2[%c0_4, %c0_5] : memref<256x32xf32, #tpu.memory_space<vmem>>, vector<256x32xf32>
    %cst = arith.constant dense<0.000000e+00> : vector<16x32xf32>
    %8 = tpu.matmul %1, %7, %cst {dimension_numbers = #tpu.dot_dimension_numbers<[1], [0], [0], [1], [0, 0, 1, 1], [], []>} : vector<16x256xf32>, vector<256x32xf32>, vector<16x32xf32> -> vector<16x32xf32>
    %c0_6 = arith.constant 0 : index
    %c0_7 = arith.constant 0 : index
    %9 = vector.load %arg4[%c0_6, %c0_7] : memref<4x16xf32, #tpu.memory_space<vmem>>, vector<4x16xf32>
    %cst_8 = arith.constant dense<0.000000e+00> : vector<4x32xf32>
    %10 = tpu.matmul %9, %8, %cst_8 {dimension_numbers = #tpu.dot_dimension_numbers<[1], [0], [0], [1], [0, 0, 1, 1], [], []>} : vector<4x16xf32>, vector<16x32xf32>, vector<4x32xf32> -> vector<4x32xf32>
    %11 = vector.broadcast %6 : vector<4x1xf32> to vector<4x32xf32>
    %12 = arith.addf %10, %11 : vector<4x32xf32>
    %cst_9 = arith.constant 3.000000e+00 : f32
    %13 = vector.broadcast %cst_9 : f32 to vector<4x32xf32>
    %14 = arith.addf %12, %13 : vector<4x32xf32>
    %cst_10 = arith.constant 0.000000e+00 : f32
    %cst_11 = arith.constant 6.000000e+00 : f32
    %15 = vector.broadcast %cst_10 : f32 to vector<4x32xf32>
    %16 = arith.maximumf %15, %14 : vector<4x32xf32>
    %17 = vector.broadcast %cst_11 : f32 to vector<4x32xf32>
    %18 = arith.minimumf %17, %16 : vector<4x32xf32>
    %19 = arith.mulf %12, %18 : vector<4x32xf32>
    %cst_12 = arith.constant 0.166666672 : f32
    %20 = vector.broadcast %cst_12 : f32 to vector<4x32xf32>
    %21 = arith.mulf %19, %20 : vector<4x32xf32>
    %c0_13 = arith.constant 0 : index
    %c0_14 = arith.constant 0 : index
    %22 = vector.load %arg5[%c0_13, %c0_14] : memref<32x4xf32, #tpu.memory_space<vmem>>, vector<32x4xf32>
    %cst_15 = arith.constant dense<0.000000e+00> : vector<32x32xf32>
    %23 = tpu.matmul %22, %21, %cst_15 {dimension_numbers = #tpu.dot_dimension_numbers<[1], [0], [0], [1], [0, 0, 1, 1], [], []>} : vector<32x4xf32>, vector<4x32xf32>, vector<32x32xf32> -> vector<32x32xf32>
    %24 = vector.broadcast %3 : vector<32x1xf32> to vector<32x32xf32>
    %25 = arith.addf %23, %24 : vector<32x32xf32>
    %26 = arith.negf %25 : vector<32x32xf32>
    %27 = math.exp %26 : vector<32x32xf32>
    %cst_16 = arith.constant 1.000000e+00 : f32
    %28 = vector.broadcast %cst_16 : f32 to vector<32x32xf32>
    %29 = arith.addf %28, %27 : vector<32x32xf32>
    %30 = arith.divf %28, %29 : vector<32x32xf32>
    %31 = vector.extract_strided_slice %30 {offsets = [0, 0], sizes = [16, 32], strides = [1, 1]} : vector<32x32xf32> to vector<16x32xf32>
    %32 = vector.broadcast %4 : vector<16x1xf32> to vector<16x32xf32>
    %33 = arith.mulf %32, %31 : vector<16x32xf32>
    %c0_17 = arith.constant 0 : index
    %c0_18 = arith.constant 0 : index
    %34 = vector.load %arg3[%c0_17, %c0_18] : memref<64x256xf32, #tpu.memory_space<vmem>>, vector<64x256xf32>
    %35 = vector.extract_strided_slice %34 {offsets = [0, 0], sizes = [32, 256], strides = [1, 1]} : vector<64x256xf32> to vector<32x256xf32>
    %cst_19 = arith.constant dense<0.000000e+00> : vector<16x256xf32>
    %36 = tpu.matmul %33, %35, %cst_19 {dimension_numbers = #tpu.dot_dimension_numbers<[1], [0], [0], [1], [0, 0, 1, 1], [], []>} : vector<16x32xf32>, vector<32x256xf32>, vector<16x256xf32> -> vector<16x256xf32>
    %37 = vector.extract_strided_slice %30 {offsets = [16, 0], sizes = [16, 32], strides = [1, 1]} : vector<32x32xf32> to vector<16x32xf32>
    %38 = vector.extract_strided_slice %34 {offsets = [32, 0], sizes = [32, 256], strides = [1, 1]} : vector<64x256xf32> to vector<32x256xf32>
    %cst_20 = arith.constant dense<0.000000e+00> : vector<16x256xf32>
    %39 = tpu.matmul %37, %38, %cst_20 {dimension_numbers = #tpu.dot_dimension_numbers<[1], [0], [0], [1], [0, 0, 1, 1], [], []>} : vector<16x32xf32>, vector<32x256xf32>, vector<16x256xf32> -> vector<16x256xf32>
    %40 = arith.mulf %36, %39 : vector<16x256xf32>
    %cst_21 = arith.constant 1.000000e+00 : f32
    %41 = vector.broadcast %cst_21 : f32 to vector<16x256xf32>
    %42 = arith.addf %40, %41 : vector<16x256xf32>
    %43 = arith.mulf %1, %42 : vector<16x256xf32>
    %44 = vector.broadcast %5 : vector<16x1xf32> to vector<16x256xf32>
    %45 = arith.addf %43, %44 : vector<16x256xf32>
    %cst_22 = arith.constant 0.000000e+00 : f32
    %46 = vector.broadcast %cst_22 : f32 to vector<16x256xf32>
    %47 = arith.maximumf %45, %46 : vector<16x256xf32>
    %c0_23 = arith.constant 0 : index
    %c0_24 = arith.constant 0 : index
    %c0_25 = arith.constant 0 : index
    %48 = vector.load %arg7[%c0_23, %c0_24, %c0_25] : memref<1x16x256xf32, #tpu.memory_space<vmem>>, vector<1x16x256xf32>
    %49 = vector.shape_cast %48 : vector<1x16x256xf32> to vector<16x256xf32>
    %50 = vector.shape_cast %47 : vector<16x256xf32> to vector<1x16x256xf32>
    tpu.vector_store %arg7[%c0_23, %c0_24, %c0_25], %50 {strides = array<i32>} : memref<1x16x256xf32, #tpu.memory_space<vmem>>, vector<1x16x256xf32>,
    return
  }
  func.func @transform_0(%arg0: i32) -> (i32, i32, i32) {
    %c0_i32 = arith.constant 0 : i32
    %c0_i32_0 = arith.constant 0 : i32
    %c0_i32_1 = arith.constant 0 : i32
    return %arg0, %c0_i32, %c0_i32_0 : i32, i32, i32
  }
  func.func @transform_1(%arg0: i32) -> (i32, i32) {
    %c0_i32 = arith.constant 0 : i32
    %c0_i32_0 = arith.constant 0 : i32
    %c0_i32_1 = arith.constant 0 : i32
    return %c0_i32, %c0_i32_0 : i32, i32
  }
  func.func @transform_2(%arg0: i32) -> (i32, i32) {
    %c0_i32 = arith.constant 0 : i32
    %c0_i32_0 = arith.constant 0 : i32
    %c0_i32_1 = arith.constant 0 : i32
    return %c0_i32, %c0_i32_0 : i32, i32
  }
  func.func @transform_3(%arg0: i32) -> (i32, i32) {
    %c0_i32 = arith.constant 0 : i32
    %c0_i32_0 = arith.constant 0 : i32
    %c0_i32_1 = arith.constant 0 : i32
    return %c0_i32, %c0_i32_0 : i32, i32
  }
  func.func @transform_4(%arg0: i32) -> (i32, i32) {
    %c0_i32 = arith.constant 0 : i32
    %c0_i32_0 = arith.constant 0 : i32
    %c0_i32_1 = arith.constant 0 : i32
    return %c0_i32, %c0_i32_0 : i32, i32
  }
  func.func @transform_5(%arg0: i32) -> (i32, i32) {
    %c0_i32 = arith.constant 0 : i32
    %c0_i32_0 = arith.constant 0 : i32
    %c0_i32_1 = arith.constant 0 : i32
    return %c0_i32, %c0_i32_0 : i32, i32
  }
  func.func @transform_6(%arg0: i32) -> (i32, i32, i32) {
    %c0_i32 = arith.constant 0 : i32
    %c0_i32_0 = arith.constant 0 : i32
    %c0_i32_1 = arith.constant 0 : i32
    return %arg0, %c0_i32, %c0_i32_0 : i32, i32, i32
  }
}

</mosaic_0001>

<llo_original>
// kernel: attention_layer.1
$region0: #{attention_layer.1}
  #allocation0 [shape = 'u32[]', space=smem, size = 0x4, offset = 0x4, fixed_abs, tag = 'smem constant byte address 0x4 - core index']
  #allocation1 [shape = 'u32[72,128]{1,0:T(1,128)}', space=vmem, size = 0x9000, scoped, tag = 'internal scratch']
  %s0 = inlined_call_operand.vmem [shape: f32[2,16,256], index: 0, kind: input, shape index: {}]
  %s1 = inlined_call_operand.vmem [shape: f32[256,32], index: 1, kind: input, shape index: {}]
  %s2 = inlined_call_operand.vmem [shape: f32[64,256], index: 2, kind: input, shape index: {}]
  %s3 = inlined_call_operand.vmem [shape: f32[4,16], index: 3, kind: input, shape index: {}]
  %s4 = inlined_call_operand.vmem [shape: f32[32,4], index: 4, kind: input, shape index: {}]
  %s5 = inlined_call_operand.vmem [shape: f32[72,1], index: 5, kind: input, shape index: {}]
  %s6 = inlined_call_operand.vmem [shape: f32[2,16,256], index: 6, kind: output, shape index: {}]
  %s7 = sld [smem:[#allocation0]]
  $region57: #{attention_layer.1} parent=0
    _
  %s9 = ssub.s32 1, %s7
  %s10 = scalar_select 0, %s9, %s7
  loop: start=0, step=1, limit=4
  $region2: #{attention_layer.1} parent=0 // loop_pre_header
    _
  $region3: #{attention_layer.1} parent=0 // loop_header
    %s12 = sphi 0, %s16
    %p13 = scmp.ge.s32.totalorder %s12, 4
    %s22 = sphi 0, %s24
    %s25 = sphi 0, %s22
    %s26 = sphi 0, %s25
    %s42 = sphi 0, %s26
    %s46 = sphi 0, %s46
    %s48 = sphi 0, %s46
    %s49 = sphi 0, %s48
    %s63 = sphi 0, %s49
    %s67 = sphi 0, %s67
    %s69 = sphi 0, %s67
    %s70 = sphi 0, %s69
    %s84 = sphi 0, %s70
    %s88 = sphi 0, %s88
    %s90 = sphi 0, %s88
    %s91 = sphi 0, %s90
    %s105 = sphi 0, %s91
    %s109 = sphi 0, %s109
    %s111 = sphi 0, %s109
    %s112 = sphi 0, %s111
    %s126 = sphi 0, %s112
    %s130 = sphi 0, %s130
    %s132 = sphi 0, %s130
    %s133 = sphi 0, %s132
    %s147 = sphi 0, %s133
    %s153 = sphi 0, %s155
    %s156 = sphi 0, %s153
    %s157 = sphi 0, %s156
    %s173 = sphi 0, %s157
  $region4: #{attention_layer.1} parent=0 // loop_header_branch
    %15 = sbr.rel (%p13) target = $region8
  $region5: #{attention_layer.1} parent=0 // loop_body
    %s17 = ssub.s32 %s12, 1
    %s18 = ssub.s32 %s12, 2
    %s19 = sadd.s32 %s12, 1
    %s20 = ssub.s32 %s12, %s19
    %p21 = scmp.eq.s32.totalorder %s20, 0
    %s23 = sadd.s32 %s22, 1
    %s24 = scalar_select %p21, %s22, %s23
    %p27 = pneg %p21
    %p28 = scmp.eq.s32.totalorder %s12, 1
    %p29 = por %p27, %p28
    %p30 = scmp.ne.s32.totalorder %s22, %s25
    %p31 = scmp.eq.s32.totalorder %s12, 0
    %p32 = por %p30, %p31
    %p33 = scmp.ne.s32.totalorder %s22, %s25
    %p34 = scmp.eq.s32.totalorder %s17, 1
    %p35 = por %p33, %p34
    %p36 = scmp.ne.s32.totalorder %s25, %s26
    %p37 = scmp.eq.s32.totalorder %s17, 0
    %p38 = por %p36, %p37
    %p39 = scmp.ne.s32.totalorder %s25, %s26
    %p40 = scmp.eq.s32.totalorder %s18, 1
    %p41 = por %p39, %p40
    %p43 = scmp.ne.s32.totalorder %s26, %s42
    %p44 = scmp.eq.s32.totalorder %s18, 0
    %p45 = por %p43, %p44
    %s47 = sadd.s32 %s46, 1
    %p50 = scmp.eq.s32.totalorder %s12, 1
    %p51 = scmp.ne.s32.totalorder %s46, %s48
    %p52 = scmp.eq.s32.totalorder %s12, 0
    %p53 = por %p51, %p52
    %p54 = scmp.ne.s32.totalorder %s46, %s48
    %p55 = scmp.eq.s32.totalorder %s17, 1
    %p56 = por %p54, %p55
    %p57 = scmp.ne.s32.totalorder %s48, %s49
    %p58 = scmp.eq.s32.totalorder %s17, 0
    %p59 = por %p57, %p58
    %p60 = scmp.ne.s32.totalorder %s48, %s49
    %p61 = scmp.eq.s32.totalorder %s18, 1
    %p62 = por %p60, %p61
    %p64 = scmp.ne.s32.totalorder %s49, %s63
    %p65 = scmp.eq.s32.totalorder %s18, 0
    %p66 = por %p64, %p65
    %s68 = sadd.s32 %s67, 1
    %p71 = scmp.eq.s32.totalorder %s12, 1
    %p72 = scmp.ne.s32.totalorder %s67, %s69
    %p73 = scmp.eq.s32.totalorder %s12, 0
    %p74 = por %p72, %p73
    %p75 = scmp.ne.s32.totalorder %s67, %s69
    %p76 = scmp.eq.s32.totalorder %s17, 1
    %p77 = por %p75, %p76
    %p78 = scmp.ne.s32.totalorder %s69, %s70
    %p79 = scmp.eq.s32.totalorder %s17, 0
    %p80 = por %p78, %p79
    %p81 = scmp.ne.s32.totalorder %s69, %s70
    %p82 = scmp.eq.s32.totalorder %s18, 1
    %p83 = por %p81, %p82
    %p85 = scmp.ne.s32.totalorder %s70, %s84
    %p86 = scmp.eq.s32.totalorder %s18, 0
    %p87 = por %p85, %p86
    %s89 = sadd.s32 %s88, 1
    %p92 = scmp.eq.s32.totalorder %s12, 1
    %p93 = scmp.ne.s32.totalorder %s88, %s90
    %p94 = scmp.eq.s32.totalorder %s12, 0
    %p95 = por %p93, %p94
    %p96 = scmp.ne.s32.totalorder %s88, %s90
    %p97 = scmp.eq.s32.totalorder %s17, 1
    %p98 = por %p96, %p97
    %p99 = scmp.ne.s32.totalorder %s90, %s91
    %p100 = scmp.eq.s32.totalorder %s17, 0
    %p101 = por %p99, %p100
    %p102 = scmp.ne.s32.totalorder %s90, %s91
    %p103 = scmp.eq.s32.totalorder %s18, 1
    %p104 = por %p102, %p103
    %p106 = scmp.ne.s32.totalorder %s91, %s105
    %p107 = scmp.eq.s32.totalorder %s18, 0
    %p108 = por %p106, %p107
    %s110 = sadd.s32 %s109, 1
    %p113 = scmp.eq.s32.totalorder %s12, 1
    %p114 = scmp.ne.s32.totalorder %s109, %s111
    %p115 = scmp.eq.s32.totalorder %s12, 0
    %p116 = por %p114, %p115
    %p117 = scmp.ne.s32.totalorder %s109, %s111
    %p118 = scmp.eq.s32.totalorder %s17, 1
    %p119 = por %p117, %p118
    %p120 = scmp.ne.s32.totalorder %s111, %s112
    %p121 = scmp.eq.s32.totalorder %s17, 0
    %p122 = por %p120, %p121
    %p123 = scmp.ne.s32.totalorder %s111, %s112
    %p124 = scmp.eq.s32.totalorder %s18, 1
    %p125 = por %p123, %p124
    %p127 = scmp.ne.s32.totalorder %s112, %s126
    %p128 = scmp.eq.s32.totalorder %s18, 0
    %p129 = por %p127, %p128
    %s131 = sadd.s32 %s130, 1
    %p134 = scmp.eq.s32.totalorder %s12, 1
    %p135 = scmp.ne.s32.totalorder %s130, %s132
    %p136 = scmp.eq.s32.totalorder %s12, 0
    %p137 = por %p135, %p136
    %p138 = scmp.ne.s32.totalorder %s130, %s132
    %p139 = scmp.eq.s32.totalorder %s17, 1
    %p140 = por %p138, %p139
    %p141 = scmp.ne.s32.totalorder %s132, %s133
    %p142 = scmp.eq.s32.totalorder %s17, 0
    %p143 = por %p141, %p142
    %p144 = scmp.ne.s32.totalorder %s132, %s133
    %p145 = scmp.eq.s32.totalorder %s18, 1
    %p146 = por %p144, %p145
    %p148 = scmp.ne.s32.totalorder %s133, %s147
    %p149 = scmp.eq.s32.totalorder %s18, 0
    %p150 = por %p148, %p149
    %s151 = ssub.s32 %s12, %s19
    %p152 = scmp.eq.s32.totalorder %s151, 0
    %s154 = sadd.s32 %s153, 1
    %s155 = scalar_select %p152, %s153, %s154
    %p158 = pneg %p152
    %p159 = scmp.eq.s32.totalorder %s12, 1
    %p160 = por %p158, %p159
    %p161 = scmp.ne.s32.totalorder %s153, %s156
    %p162 = scmp.eq.s32.totalorder %s12, 0
    %p163 = por %p161, %p162
    %p164 = scmp.ne.s32.totalorder %s153, %s156
    %p165 = scmp.eq.s32.totalorder %s17, 1
    %p166 = por %p164, %p165
    %p167 = scmp.ne.s32.totalorder %s156, %s157
    %p168 = scmp.eq.s32.totalorder %s17, 0
    %p169 = por %p167, %p168
    %p170 = scmp.ne.s32.totalorder %s156, %s157
    %p171 = scmp.eq.s32.totalorder %s18, 1
    %p172 = por %p170, %p171
    %p174 = scmp.ne.s32.totalorder %s157, %s173
    %p175 = scmp.eq.s32.totalorder %s18, 0
    %p176 = por %p174, %p175
    %p177 = scmp.le.s32.totalorder 1, %s12
    %p178 = scmp.lt.s32.totalorder %s12, 3
    %p179 = pnand %p177, %p178
    %p180 = pneg %p179
    // Predicated region
    $region9: #{attention_layer.1} parent=5 // pred_check
      _
    $region10: #{attention_layer.1} parent=5 // pred_check_branch
      %182 = sbr.rel (%p179) target = $region12
    $region11: #{attention_layer.1} parent=5 // pred_region
      %s183 = ssub.s32 %s12, 1
      // Predicated region
      $region13: #{attention_layer.1} parent=11 // pred_check
        %p184 = pneg %p59
      $region14: #{attention_layer.1} parent=11 // pred_check_branch
        %186 = sbr.rel (%p184) target = $region16
      $region15: #{attention_layer.1} parent=11 // pred_region
        _
      $region16: #{attention_layer.1} parent=11 // pred_fallthru
        _
      // Predicated region
      $region17: #{attention_layer.1} parent=11 // pred_check
        %p187 = pneg %p80
      $region18: #{attention_layer.1} parent=11 // pred_check_branch
        %189 = sbr.rel (%p187) target = $region20
      $region19: #{attention_layer.1} parent=11 // pred_region
        _
      $region20: #{attention_layer.1} parent=11 // pred_fallthru
        _
      // Predicated region
      $region21: #{attention_layer.1} parent=11 // pred_check
        %p190 = pneg %p101
      $region22: #{attention_layer.1} parent=11 // pred_check_branch
        %192 = sbr.rel (%p190) target = $region24
      $region23: #{attention_layer.1} parent=11 // pred_region
        _
      $region24: #{attention_layer.1} parent=11 // pred_fallthru
        _
      // Predicated region
      $region25: #{attention_layer.1} parent=11 // pred_check
        %p193 = pneg %p122
      $region26: #{attention_layer.1} parent=11 // pred_check_branch
        %195 = sbr.rel (%p193) target = $region28
      $region27: #{attention_layer.1} parent=11 // pred_region
        _
      $region28: #{attention_layer.1} parent=11 // pred_fallthru
        _
      // Predicated region
      $region29: #{attention_layer.1} parent=11 // pred_check
        %p196 = pneg %p143
      $region30: #{attention_layer.1} parent=11 // pred_check_branch
        %198 = sbr.rel (%p196) target = $region32
      $region31: #{attention_layer.1} parent=11 // pred_region
        _
      $region32: #{attention_layer.1} parent=11 // pred_fallthru
        _
    $region12: #{attention_layer.1} parent=5 // pred_fallthru
      _
    %p199 = scmp.lt.s32.totalorder %s12, 2
    // Predicated region
    $region33: #{attention_layer.1} parent=5 // pred_check
      %p200 = pneg %p199
    $region34: #{attention_layer.1} parent=5 // pred_check_branch
      %202 = sbr.rel (%p200) target = $region36
    $region35: #{attention_layer.1} parent=5 // pred_region
      // Predicated region
      $region37: #{attention_layer.1} parent=35 // pred_check
        %p203 = pneg %p32
      $region38: #{attention_layer.1} parent=35 // pred_check_branch
        %205 = sbr.rel (%p203) target = $region40
      $region39: #{attention_layer.1} parent=35 // pred_region
        %p206 = scmp.lt.s32.totalorder %s12, 1
        %s207 = scalar_select %p206, %s12, 1
        %s208 = smul.addr %s207, 4
        %s209 = smul.addr %s208, 8
        %s210 = scalar_lea.vmem %s0, %s209
      $region40: #{attention_layer.1} parent=35 // pred_fallthru
        _
    $region36: #{attention_layer.1} parent=5 // pred_fallthru
      _
    %p211 = scmp.le.s32.totalorder 1, %s12
    %p212 = scmp.lt.s32.totalorder %s12, 3
    %p213 = pnand %p211, %p212
    %p214 = pneg %p213
    // Predicated region
    $region41: #{attention_layer.1} parent=5 // pred_check
      _
    $region42: #{attention_layer.1} parent=5 // pred_check_branch
      %216 = sbr.rel (%p213) target = $region44
    $region43: #{attention_layer.1} parent=5 // pred_region
      %s217 = ssub.s32 %s12, 1
      %p218 = scmp.lt.s32.totalorder %s17, 1
      %s219 = scalar_select %p218, %s17, 1
      %s220 = smul.addr %s219, 4
      %s221 = smul.addr %s220, 8
      %s222 = scalar_lea.vmem %s0, %s221
      %p223 = pneg %p38
      %p224 = pneg %p35
      %p225 = pneg %p59
      %p226 = pneg %p56
      %p227 = pneg %p80
      %p228 = pneg %p77
      %p229 = pneg %p101
      %p230 = pneg %p98
      %p231 = pneg %p122
      %p232 = pneg %p119
      %p233 = pneg %p143
      %p234 = pneg %p140
      %p235 = pneg %p169
      %p236 = pneg %p166
      %p237 = scmp.lt.s32.totalorder %s17, 1
      %s238 = scalar_select %p237, %s17, 1
      %s239 = smul.addr %s238, 4
      %s240 = smul.addr %s239, 8
      %s241 = scalar_lea.vmem %s6, %s240
      %p242 = scmp.lt.s32.totalorder %s17, 1
      %s243 = scalar_select %p242, %s17, 1
      %s244 = smul.addr %s243, 4
      %s245 = smul.addr %s244, 8
      %s246 = scalar_lea.vmem %s0, %s245
      %p247 = scmp.lt.s32.totalorder %s17, 1
      %s248 = scalar_select %p247, %s17, 1
      %s249 = smul.addr %s248, 4
      %s250 = smul.addr %s249, 8
      %s251 = scalar_lea.vmem %s6, %s250
      %v252 = vld [vmem:[%s246] sm:$0xff]
      %v253 = vld [vmem:[%s246 + $0x8] sm:$0xff]
      %v254 = vld [vmem:[%s246 + $0x10] sm:$0xff]
      %v255 = vld [vmem:[%s246 + $0x18] sm:$0xff]
      %v256 = vld [vmem:[%s5] sm:$0xff]
      %v257 = vld [vmem:[%s5 + $0x8] sm:$0xff]
      %v258 = vld [vmem:[%s5 + $0x10] sm:$0xff]
      %v259 = vld [vmem:[%s5 + $0x18] sm:$0xff]
      %v260 = vld [vmem:[%s5 + $0x20] sm:$0xff]
      %v261 = vld [vmem:[%s5 + $0x28] sm:$0xff]
      %v262 = vld [vmem:[%s5 + $0x30] sm:$0xff]
      %v263 = vld [vmem:[%s5 + $0x38] sm:$0xff]
      %v264 = vld [vmem:[%s5 + $0x40] sm:$0xff]
      %v265 = vld [vmem:[%s1] sm:$0xff]
      %v266 = vld [vmem:[%s1 + $0x8] sm:$0xff]
      %v267 = vld [vmem:[%s1 + $0x10] sm:$0xff]
      %v268 = vld [vmem:[%s1 + $0x18] sm:$0xff]
      %v269 = vld [vmem:[%s1 + $0x20] sm:$0xff]
      %v270 = vld [vmem:[%s1 + $0x28] sm:$0xff]
      %v271 = vld [vmem:[%s1 + $0x30] sm:$0xff]
      %v272 = vld [vmem:[%s1 + $0x38] sm:$0xff]
      %v273 = vld [vmem:[%s1 + $0x40] sm:$0xff]
      %v274 = vld [vmem:[%s1 + $0x48] sm:$0xff]
      %v275 = vld [vmem:[%s1 + $0x50] sm:$0xff]
      %v276 = vld [vmem:[%s1 + $0x58] sm:$0xff]
      %v277 = vld [vmem:[%s1 + $0x60] sm:$0xff]
      %v278 = vld [vmem:[%s1 + $0x68] sm:$0xff]
      %v279 = vld [vmem:[%s1 + $0x70] sm:$0xff]
      %v280 = vld [vmem:[%s1 + $0x78] sm:$0xff]
      %v281 = vld [vmem:[%s1 + $0x80] sm:$0xff]
      %v282 = vld [vmem:[%s1 + $0x88] sm:$0xff]
      %v283 = vld [vmem:[%s1 + $0x90] sm:$0xff]
      %v284 = vld [vmem:[%s1 + $0x98] sm:$0xff]
      %v285 = vld [vmem:[%s1 + $0xa0] sm:$0xff]
      %v286 = vld [vmem:[%s1 + $0xa8] sm:$0xff]
      %v287 = vld [vmem:[%s1 + $0xb0] sm:$0xff]
      %v288 = vld [vmem:[%s1 + $0xb8] sm:$0xff]
      %v289 = vld [vmem:[%s1 + $0xc0] sm:$0xff]
      %v290 = vld [vmem:[%s1 + $0xc8] sm:$0xff]
      %v291 = vld [vmem:[%s1 + $0xd0] sm:$0xff]
      %v292 = vld [vmem:[%s1 + $0xd8] sm:$0xff]
      %v293 = vld [vmem:[%s1 + $0xe0] sm:$0xff]
      %v294 = vld [vmem:[%s1 + $0xe8] sm:$0xff]
      %v295 = vld [vmem:[%s1 + $0xf0] sm:$0xff]
      %v296 = vld [vmem:[%s1 + $0xf8] sm:$0xff]
      %297 = vmatpush.msra.mxu0 %v280
      %298 = vmatpush.msra.mxu0 %v279
      %299 = vmatpush.msra.mxu0 %v278
      %300 = vmatpush.msra.mxu0 %v277
      %301 = vmatpush.msra.mxu0 %v276
      %302 = vmatpush.msra.mxu0 %v275
      %303 = vmatpush.msra.mxu0 %v274
      %304 = vmatpush.msra.mxu0 %v273
      %305 = vmatpush.msra.mxu0 %v272
      %306 = vmatpush.msra.mxu0 %v271
      %307 = vmatpush.msra.mxu0 %v270
      %308 = vmatpush.msra.mxu0 %v269
      %309 = vmatpush.msra.mxu0 %v268
      %310 = vmatpush.msra.mxu0 %v267
      %311 = vmatpush.msra.mxu0 %v266
      %312 = vmatpush.msra.mxu0 %v265
      %313 = vmatmul.f32.gmra.mxu0 %v252
      %v314 = vpop.f32.mrf.mxu0
      %v315 = vadd.f32 0.0, %v314
      %316 = vmatmul.f32.gmra.mxu0 %v254
      %v317 = vpop.f32.mrf.mxu0
      %v318 = vadd.f32 0.0, %v317
      %319 = vdwg.mxu0
      %320 = vmatpush.msra.mxu0 %v296
      %321 = vmatpush.msra.mxu0 %v295
      %322 = vmatpush.msra.mxu0 %v294
      %323 = vmatpush.msra.mxu0 %v293
      %324 = vmatpush.msra.mxu0 %v292
      %325 = vmatpush.msra.mxu0 %v291
      %326 = vmatpush.msra.mxu0 %v290
      %327 = vmatpush.msra.mxu0 %v289
      %328 = vmatpush.msra.mxu0 %v288
      %329 = vmatpush.msra.mxu0 %v287
      %330 = vmatpush.msra.mxu0 %v286
      %331 = vmatpush.msra.mxu0 %v285
      %332 = vmatpush.msra.mxu0 %v284
      %333 = vmatpush.msra.mxu0 %v283
      %334 = vmatpush.msra.mxu0 %v282
      %335 = vmatpush.msra.mxu0 %v281
      %336 = vmatmul.f32.gmra.mxu0 %v253
      %v337 = vpop.f32.mrf.mxu0
      %v338 = vadd.f32 %v315, %v337
      %339 = vmatmul.f32.gmra.mxu0 %v255
      %v340 = vpop.f32.mrf.mxu0
      %v341 = vadd.f32 %v318, %v340
      %342 = vdwg.mxu0
      %v343 = vld [vmem:[%s3] sm:$0xf]
      %345 = vset.pattern.permute.xlu0 0
      %346 = vperm.xlu0 %345, %v264
      %v347 = vpop.permute.xlu0 %346
      %vm349 = vcmask 130048
      %v351 = vsel %vm349, %v343, 0
      %353 = vmatpush.msra.mxu0 0.0
      %354 = vmatpush.msra.mxu0 0.0
      %355 = vmatpush.msra.mxu0 0.0
      %356 = vmatpush.msra.mxu0 0.0
      %357 = vmatpush.msra.mxu0 0.0
      %358 = vmatpush.msra.mxu0 0.0
      %359 = vmatpush.msra.mxu0 0.0
      %360 = vmatpush.msra.mxu0 0.0
      %361 = vmatpush.msra.mxu0 0.0
      %362 = vmatpush.msra.mxu0 0.0
      %363 = vmatpush.msra.mxu0 0.0
      %364 = vmatpush.msra.mxu0 0.0
      %365 = vmatpush.msra.mxu0 0.0
      %366 = vmatpush.msra.mxu0 0.0
      %367 = vmatpush.msra.mxu0 %v341
      %368 = vmatpush.msra.mxu0 %v338
      %369 = vmatmul.f32.gmra.mxu0 %v351
      %v370 = vpop.f32.mrf.mxu0
      %v371 = vadd.f32 %v347, %v370
      %372 = vdwg.mxu0
      %v373 = vadd.f32 %v371, 3.0
      %v374 = vmax.f32 %v373, 0.0
      %v375 = vmin.f32 %v374, 6.0
      %v376 = vmul.f32 %v371, %v375
      %v377 = vmul.f32 %v376, 0.16666667
      %v378 = vld [vmem:[%s4] sm:$0xff]
      %v379 = vld [vmem:[%s4 + $0x8] sm:$0xff]
      %v380 = vld [vmem:[%s4 + $0x10] sm:$0xff]
      %v381 = vld [vmem:[%s4 + $0x18] sm:$0xff]
      %383 = vset.pattern.permute.xlu0 0
      %384 = vperm.xlu0 %383, %v256
      %v385 = vpop.permute.xlu0 %384
      %388 = vset.pattern.permute.xlu0 0
      %389 = vperm.xlu0 %388, %v257
      %v390 = vpop.permute.xlu0 %389
      %393 = vset.pattern.permute.xlu0 0
      %394 = vperm.xlu0 %393, %v258
      %v395 = vpop.permute.xlu0 %394
      %398 = vset.pattern.permute.xlu0 0
      %399 = vperm.xlu0 %398, %v259
      %v400 = vpop.permute.xlu0 %399
      %vm402 = vcmask 31744
      %v404 = vsel %vm402, %v378, 0
      %v407 = vsel %vm402, %v379, 0
      %v410 = vsel %vm402, %v380, 0
      %v413 = vsel %vm402, %v381, 0
      %vm415 = vcmask 1043456
      %v417 = vsel %vm415, %v377, 0
      %419 = vmatpush.msra.mxu0 0.0
      %420 = vmatpush.msra.mxu0 0.0
      %421 = vmatpush.msra.mxu0 0.0
      %422 = vmatpush.msra.mxu0 0.0
      %423 = vmatpush.msra.mxu0 0.0
      %424 = vmatpush.msra.mxu0 0.0
      %425 = vmatpush.msra.mxu0 0.0
      %426 = vmatpush.msra.mxu0 0.0
      %427 = vmatpush.msra.mxu0 0.0
      %428 = vmatpush.msra.mxu0 0.0
      %429 = vmatpush.msra.mxu0 0.0
      %430 = vmatpush.msra.mxu0 0.0
      %431 = vmatpush.msra.mxu0 0.0
      %432 = vmatpush.msra.mxu0 0.0
      %433 = vmatpush.msra.mxu0 0.0
      %434 = vmatpush.msra.mxu0 %v417
      %435 = vmatmul.f32.gmra.mxu0 %v404
      %v436 = vpop.f32.mrf.mxu0
      %v437 = vadd.f32 %v385, %v436
      %438 = vmatmul.f32.gmra.mxu0 %v407
      %v439 = vpop.f32.mrf.mxu0
      %v440 = vadd.f32 %v390, %v439
      %441 = vmatmul.f32.gmra.mxu0 %v410
      %v442 = vpop.f32.mrf.mxu0
      %v443 = vadd.f32 %v395, %v442
      %444 = vmatmul.f32.gmra.mxu0 %v413
      %v445 = vpop.f32.mrf.mxu0
      %v446 = vadd.f32 %v400, %v445
      %447 = vdwg.mxu0
      %v448 = vxor.u32 %v437, 2147483648
      %v449 = vxor.u32 %v440, 2147483648
      %v450 = vxor.u32 %v443, 2147483648
      %v451 = vxor.u32 %v446, 2147483648
      %v452 = vmul.f32 %v448, 1.442695
      %v453 = vpow.pop %v452
      %v454 = vmul.f32 %v449, 1.442695
      %v455 = vpow.pop %v454
      %v456 = vmul.f32 %v450, 1.442695
      %v457 = vpow.pop %v456
      %v458 = vmul.f32 %v451, 1.442695
      %v459 = vpow.pop %v458
      %v460 = vadd.f32 %v453, 1.0
      %v461 = vadd.f32 %v455, 1.0
      %v462 = vadd.f32 %v457, 1.0
      %v463 = vadd.f32 %v459, 1.0
      %v464 = vrcp.pop %v460
      %v465 = vmul.f32 %v460, %v464
      %v466 = vsub.f32 1.0, %v465
      %v467 = vmul.f32 %v464, %v466
      %v468 = vadd.f32 %v464, %v467
      %vm469 = vweird.f32 %v460
      %vm470 = vweird.f32 %v464
      %vm471 = vmor %vm469, %vm470
      %v472 = vsel %vm471, %v464, %v468
      %v473 = vand.u32 2147483647, %v460
      %vm474 = vcmp.eq.f32.partialorder %v473, 8.507059e+37
      %v475 = vand.u32 %v460, 2147483648
      %v476 = vor.u32 1.1754944e-38, %v475
      %v477 = vsel %vm474, %v476, %v472
      %v478 = vmul.f32 1.0, %v477
      %v479 = vrcp.pop %v461
      %v480 = vmul.f32 %v461, %v479
      %v481 = vsub.f32 1.0, %v480
      %v482 = vmul.f32 %v479, %v481
      %v483 = vadd.f32 %v479, %v482
      %vm484 = vweird.f32 %v461
      %vm485 = vweird.f32 %v479
      %vm486 = vmor %vm484, %vm485
      %v487 = vsel %vm486, %v479, %v483
      %v488 = vand.u32 2147483647, %v461
      %vm489 = vcmp.eq.f32.partialorder %v488, 8.507059e+37
      %v490 = vand.u32 %v461, 2147483648
      %v491 = vor.u32 1.1754944e-38, %v490
      %v492 = vsel %vm489, %v491, %v487
      %v493 = vmul.f32 1.0, %v492
      %v494 = vrcp.pop %v462
      %v495 = vmul.f32 %v462, %v494
      %v496 = vsub.f32 1.0, %v495
      %v497 = vmul.f32 %v494, %v496
      %v498 = vadd.f32 %v494, %v497
      %vm499 = vweird.f32 %v462
      %vm500 = vweird.f32 %v494
      %vm501 = vmor %vm499, %vm500
      %v502 = vsel %vm501, %v494, %v498
      %v503 = vand.u32 2147483647, %v462
      %vm504 = vcmp.eq.f32.partialorder %v503, 8.507059e+37
      %v505 = vand.u32 %v462, 2147483648
      %v506 = vor.u32 1.1754944e-38, %v505
      %v507 = vsel %vm504, %v506, %v502
      %v508 = vmul.f32 1.0, %v507
      %v509 = vrcp.pop %v463
      %v510 = vmul.f32 %v463, %v509
      %v511 = vsub.f32 1.0, %v510
      %v512 = vmul.f32 %v509, %v511
      %v513 = vadd.f32 %v509, %v512
      %vm514 = vweird.f32 %v463
      %vm515 = vweird.f32 %v509
      %vm516 = vmor %vm514, %vm515
      %v517 = vsel %vm516, %v509, %v513
      %v518 = vand.u32 2147483647, %v463
      %vm519 = vcmp.eq.f32.partialorder %v518, 8.507059e+37
      %v520 = vand.u32 %v463, 2147483648
      %v521 = vor.u32 1.1754944e-38, %v520
      %v522 = vsel %vm519, %v521, %v517
      %v523 = vmul.f32 1.0, %v522
      %525 = vset.pattern.permute.xlu0 0
      %526 = vperm.xlu0 %525, %v260
      %v527 = vpop.permute.xlu0 %526
      %530 = vset.pattern.permute.xlu0 0
      %531 = vperm.xlu0 %530, %v261
      %v532 = vpop.permute.xlu0 %531
      %v534 = vmul.f32 %v527, %v478
      %v535 = vmul.f32 %v532, %v493
      %v536 = vld [vmem:[%s2] sm:$0xff]
      %v537 = vld [vmem:[%s2 + $0x8] sm:$0xff]
      %v538 = vld [vmem:[%s2 + $0x10] sm:$0xff]
      %v539 = vld [vmem:[%s2 + $0x18] sm:$0xff]
      %v540 = vld [vmem:[%s2 + $0x20] sm:$0xff]
      %v541 = vld [vmem:[%s2 + $0x28] sm:$0xff]
      %v542 = vld [vmem:[%s2 + $0x30] sm:$0xff]
      %v543 = vld [vmem:[%s2 + $0x38] sm:$0xff]
      %v544 = vld [vmem:[%s2 + $0x40] sm:$0xff]
      %v545 = vld [vmem:[%s2 + $0x48] sm:$0xff]
      %v546 = vld [vmem:[%s2 + $0x50] sm:$0xff]
      %v547 = vld [vmem:[%s2 + $0x58] sm:$0xff]
      %v548 = vld [vmem:[%s2 + $0x60] sm:$0xff]
      %v549 = vld [vmem:[%s2 + $0x68] sm:$0xff]
      %v550 = vld [vmem:[%s2 + $0x70] sm:$0xff]
      %v551 = vld [vmem:[%s2 + $0x78] sm:$0xff]
      %vm552 = vcmask 261120
      %v554 = vsel %vm552, %v534, 0
      %v557 = vsel %vm552, %v535, 0
      %559 = vmatpush.msra.mxu0 0.0
      %560 = vmatpush.msra.mxu0 0.0
      %561 = vmatpush.msra.mxu0 0.0
      %562 = vmatpush.msra.mxu0 0.0
      %563 = vmatpush.msra.mxu0 0.0
      %564 = vmatpush.msra.mxu0 0.0
      %565 = vmatpush.msra.mxu0 0.0
      %566 = vmatpush.msra.mxu0 0.0
      %567 = vmatpush.msra.mxu0 0.0
      %568 = vmatpush.msra.mxu0 0.0
      %569 = vmatpush.msra.mxu0 0.0
      %570 = vmatpush.msra.mxu0 0.0
      %571 = vmatpush.msra.mxu0 %v542
      %572 = vmatpush.msra.mxu0 %v540
      %573 = vmatpush.msra.mxu0 %v538
      %574 = vmatpush.msra.mxu0 %v536
      %575 = vmatmul.f32.gmra.mxu0 %v554
      %v576 = vpop.f32.mrf.mxu0
      %v577 = vadd.f32 0.0, %v576
      %578 = vmatmul.f32.gmra.mxu0 %v557
      %v579 = vpop.f32.mrf.mxu0
      %v580 = vadd.f32 0.0, %v579
      %581 = vdwg.mxu0
      %582 = vmatpush.msra.mxu0 0.0
      %583 = vmatpush.msra.mxu0 0.0
      %584 = vmatpush.msra.mxu0 0.0
      %585 = vmatpush.msra.mxu0 0.0
      %586 = vmatpush.msra.mxu0 0.0
      %587 = vmatpush.msra.mxu0 0.0
      %588 = vmatpush.msra.mxu0 0.0
      %589 = vmatpush.msra.mxu0 0.0
      %590 = vmatpush.msra.mxu0 0.0
      %591 = vmatpush.msra.mxu0 0.0
      %592 = vmatpush.msra.mxu0 0.0
      %593 = vmatpush.msra.mxu0 0.0
      %594 = vmatpush.msra.mxu0 %v543
      %595 = vmatpush.msra.mxu0 %v541
      %596 = vmatpush.msra.mxu0 %v539
      %597 = vmatpush.msra.mxu0 %v537
      %598 = vmatmul.f32.gmra.mxu0 %v554
      %v599 = vpop.f32.mrf.mxu0
      %v600 = vadd.f32 0.0, %v599
      %601 = vmatmul.f32.gmra.mxu0 %v557
      %v602 = vpop.f32.mrf.mxu0
      %v603 = vadd.f32 0.0, %v602
      %604 = vdwg.mxu0
      %v606 = vsel %vm552, %v508, 0
      %v609 = vsel %vm552, %v523, 0
      %611 = vmatpush.msra.mxu0 0.0
      %612 = vmatpush.msra.mxu0 0.0
      %613 = vmatpush.msra.mxu0 0.0
      %614 = vmatpush.msra.mxu0 0.0
      %615 = vmatpush.msra.mxu0 0.0
      %616 = vmatpush.msra.mxu0 0.0
      %617 = vmatpush.msra.mxu0 0.0
      %618 = vmatpush.msra.mxu0 0.0
      %619 = vmatpush.msra.mxu0 0.0
      %620 = vmatpush.msra.mxu0 0.0
      %621 = vmatpush.msra.mxu0 0.0
      %622 = vmatpush.msra.mxu0 0.0
      %623 = vmatpush.msra.mxu0 %v550
      %624 = vmatpush.msra.mxu0 %v548
      %625 = vmatpush.msra.mxu0 %v546
      %626 = vmatpush.msra.mxu0 %v544
      %627 = vmatmul.f32.gmra.mxu0 %v606
      %v628 = vpop.f32.mrf.mxu0
      %v629 = vadd.f32 0.0, %v628
      %630 = vmatmul.f32.gmra.mxu0 %v609
      %v631 = vpop.f32.mrf.mxu0
      %v632 = vadd.f32 0.0, %v631
      %633 = vdwg.mxu0
      %634 = vmatpush.msra.mxu0 0.0
      %635 = vmatpush.msra.mxu0 0.0
      %636 = vmatpush.msra.mxu0 0.0
      %637 = vmatpush.msra.mxu0 0.0
      %638 = vmatpush.msra.mxu0 0.0
      %639 = vmatpush.msra.mxu0 0.0
      %640 = vmatpush.msra.mxu0 0.0
      %641 = vmatpush.msra.mxu0 0.0
      %642 = vmatpush.msra.mxu0 0.0
      %643 = vmatpush.msra.mxu0 0.0
      %644 = vmatpush.msra.mxu0 0.0
      %645 = vmatpush.msra.mxu0 0.0
      %646 = vmatpush.msra.mxu0 %v551
      %647 = vmatpush.msra.mxu0 %v549
      %648 = vmatpush.msra.mxu0 %v547
      %649 = vmatpush.msra.mxu0 %v545
      %650 = vmatmul.f32.gmra.mxu0 %v606
      %v651 = vpop.f32.mrf.mxu0
      %v652 = vadd.f32 0.0, %v651
      %653 = vmatmul.f32.gmra.mxu0 %v609
      %v654 = vpop.f32.mrf.mxu0
      %v655 = vadd.f32 0.0, %v654
      %656 = vdwg.mxu0
      %v657 = vmul.f32 %v577, %v629
      %v658 = vmul.f32 %v600, %v652
      %v659 = vmul.f32 %v580, %v632
      %v660 = vmul.f32 %v603, %v655
      %v661 = vadd.f32 %v657, 1.0
      %v662 = vadd.f32 %v658, 1.0
      %v663 = vadd.f32 %v659, 1.0
      %v664 = vadd.f32 %v660, 1.0
      %v665 = vmul.f32 %v252, %v661
      %v666 = vmul.f32 %v253, %v662
      %v667 = vmul.f32 %v254, %v663
      %v668 = vmul.f32 %v255, %v664
      %670 = vset.pattern.permute.xlu0 0
      %671 = vperm.xlu0 %670, %v262
      %v672 = vpop.permute.xlu0 %671
      %675 = vset.pattern.permute.xlu0 0
      %676 = vperm.xlu0 %675, %v263
      %v677 = vpop.permute.xlu0 %676
      %v679 = vadd.f32 %v665, %v672
      %v680 = vadd.f32 %v666, %v672
      %v681 = vadd.f32 %v667, %v677
      %v682 = vadd.f32 %v668, %v677
      %v683 = vmax.f32 %v679, 0.0
      %v684 = vmax.f32 %v680, 0.0
      %v685 = vmax.f32 %v681, 0.0
      %v686 = vmax.f32 %v682, 0.0
      %687 = vst [vmem:[%s251] sm:$0xff] %v683
      %688 = vst [vmem:[%s251 + $0x8] sm:$0xff] %v684
      %689 = vst [vmem:[%s251 + $0x10] sm:$0xff] %v685
      %690 = vst [vmem:[%s251 + $0x18] sm:$0xff] %v686
      %p691 = scmp.lt.s32.totalorder %s17, 1
      %s692 = scalar_select %p691, %s17, 1
      %s693 = smul.addr %s692, 4
      %s694 = smul.addr %s693, 8
      %s695 = scalar_lea.vmem %s6, %s694
      // Predicated region
      $region45: #{attention_layer.1} parent=43 // pred_check
        %p696 = pneg %p166
      $region46: #{attention_layer.1} parent=43 // pred_check_branch
        %698 = sbr.rel (%p696) target = $region48
      $region47: #{attention_layer.1} parent=43 // pred_region
        _
      $region48: #{attention_layer.1} parent=43 // pred_fallthru
        _
    $region44: #{attention_layer.1} parent=5 // pred_fallthru
      _
    %p699 = scmp.le.s32.totalorder 2, %s12
    // Predicated region
    $region49: #{attention_layer.1} parent=5 // pred_check
      %p700 = pneg %p699
    $region50: #{attention_layer.1} parent=5 // pred_check_branch
      %702 = sbr.rel (%p700) target = $region52
    $region51: #{attention_layer.1} parent=5 // pred_region
      %s703 = ssub.s32 %s12, 2
      // Predicated region
      $region53: #{attention_layer.1} parent=51 // pred_check
        %p704 = pneg %p172
      $region54: #{attention_layer.1} parent=51 // pred_check_branch
        %706 = sbr.rel (%p704) target = $region56
      $region55: #{attention_layer.1} parent=51 // pred_region
        %p707 = scmp.lt.s32.totalorder %s18, 1
        %s708 = scalar_select %p707, %s18, 1
        %s709 = smul.addr %s708, 4
        %s710 = smul.addr %s709, 8
        %s711 = scalar_lea.vmem %s6, %s710
      $region56: #{attention_layer.1} parent=51 // pred_fallthru
        _
    $region52: #{attention_layer.1} parent=5 // pred_fallthru
      _
  $region6: #{attention_layer.1} parent=0 // loop_footer
    %s16 = sadd.s32 1, %s12
  $region7: #{attention_layer.1} parent=0 // loop_footer_branch
    %11 = sbr.rel target = $region3
  $region8: #{attention_layer.1} parent=0 // loop_exit
    _

</llo_original>
